<compile_context>
chip_gen: v6e
topology: v6e:2x2x1
jax: 0.10.0
libtpu: 0.0.40
codegen_flags: <defaults>
</compile_context>

<pallas_src>
import functools
import math

import jax
import jax.numpy as jnp
from jax.experimental import pallas as pl
from jax.experimental.pallas import tpu as pltpu

ALPHA = 10.0
BETA = 3.0

_LANES = 128                    # lane width (fast axis)
_SUBLANES = 8                   # f32 sublane packing
_MAX_TILE_ROWS = 4096           # 4096*128*4 B = 2 MiB per f32 plane per tile
_VMEM_BUDGET_BYTES = 24 << 20   # double-buffered working set target
_VMEM_LIMIT_BYTES = 32 << 20    # explicit scoped-VMEM limit (safe on v5e/v6e/v7x)


def _center_cost_kernel(centers_ref, pts_ref, out_ref, *, num_gt, log_alpha, beta):
    # centers_ref: SMEM (2*G,)           f32 flat [cx0, cy0, cx1, cy1, ...]
    # pts_ref:     VMEM (2, TILE_R, 128) f32 -> [x-plane; y-plane] for this tile
    # out_ref:     VMEM (G, TILE_R, 128) f32
    x = pts_ref[0]
    y = pts_ref[1]
    la = jnp.float32(log_alpha)
    b = jnp.float32(beta)
    for g in range(num_gt):  # G is small & static; point tile reused across boxes
        dx = centers_ref[2 * g] - x
        dy = centers_ref[2 * g + 1] - y
        dist = jnp.sqrt(dx * dx + dy * dy)
        # alpha ** (dist - beta) == exp((dist - beta) * ln(alpha))  (EUP path)
        out_ref[g] = jnp.exp((dist - b) * la)


def prepare_grid_points(grid_points: jax.Array) -> jax.Array:
    """Layout plumbing: (n, 2) -> lane-dense (2, rows_pad, 128) slab.

    Cacheable: RTMDet grid points are static priors per feature-map size, so
    callers should build this once and reuse it across GT boxes / iterations.
    Padding is sublane-only (rows rounded to a multiple of 8).
    """
    grid_points = grid_points.astype(jnp.float32)
    n = grid_points.shape[0]
    rows = pl.cdiv(n, _LANES)
    rows_pad = pl.cdiv(rows, _SUBLANES) * _SUBLANES
    n_pad = rows_pad * _LANES
    pts = jnp.pad(grid_points.T, ((0, 0), (0, n_pad - n)))   # (2, n_pad)
    return pts.reshape(2, rows_pad, _LANES)                  # (2, R, 128)


def _pick_tile_rows(rows_pad: int, num_gt: int) -> int:
    # Double-buffered VMEM per row of tile: 2 bufs * (2 input + G output) planes.
    bytes_per_row = _LANES * 4 * 2 * (2 + num_gt)
    budget_rows = (_VMEM_BUDGET_BYTES // bytes_per_row) // _SUBLANES * _SUBLANES
    tile_rows = min(_MAX_TILE_ROWS, max(budget_rows, _SUBLANES))
    # v7x: aim for >= 2 grid steps so the "parallel" axis can split across 2 TCs.
    half = pl.cdiv(pl.cdiv(rows_pad, 2), _SUBLANES) * _SUBLANES
    tile_rows = min(tile_rows, max(half, _SUBLANES))
    return min(tile_rows, rows_pad)


def center_cost_batched(gt_bboxes: jax.Array, pts_slab: jax.Array,
                        alpha: float = ALPHA, beta: float = BETA) -> jax.Array:
    """Batched CenterCost.

    gt_bboxes: (G, 4) float32 (x_min, y_min, x_max, y_max)
    pts_slab:  (2, rows_pad, 128) from `prepare_grid_points`
    returns:   (G, rows_pad * 128) padded cost matrix (padded lanes are garbage;
               slice/mask to the original n downstream).
    """
    if alpha <= 0:
        raise ValueError("alpha must be > 0 (exp/log formulation).")
    gt_bboxes = gt_bboxes.astype(jnp.float32)
    num_gt = gt_bboxes.shape[0]
    rows_pad = pts_slab.shape[1]

    centers = (gt_bboxes[:, :2] + gt_bboxes[:, 2:]) * 0.5    # (G, 2)
    centers_flat = centers.reshape(-1)                       # (2G,) scalars -> SMEM

    tile_rows = _pick_tile_rows(rows_pad, num_gt)
    grid = (pl.cdiv(rows_pad, tile_rows),)                   # partial last block OK

    kernel = functools.partial(_center_cost_kernel, num_gt=num_gt,
                               log_alpha=float(math.log(alpha)),
                               beta=float(beta))

    out = pl.pallas_call(
        kernel,
        out_shape=jax.ShapeDtypeStruct((num_gt, rows_pad, _LANES), jnp.float32),
        grid=grid,
        in_specs=[
            pl.BlockSpec(memory_space=pltpu.SMEM),                      # centers
            pl.BlockSpec((2, tile_rows, _LANES), lambda i: (0, i, 0)),  # pts
        ],
        out_specs=pl.BlockSpec((num_gt, tile_rows, _LANES), lambda i: (0, i, 0)),
        compiler_params=pltpu.CompilerParams(
            dimension_semantics=("parallel",),
            vmem_limit_bytes=_VMEM_LIMIT_BYTES,
        ),
    )(centers_flat, pts_slab)

    return out.reshape(num_gt, -1)                           # (G, n_pad), padded


def center_cost(gt_bbox: jax.Array, grid_points: jax.Array,
                alpha: float = ALPHA, beta: float = BETA) -> jax.Array:
    """Exact JAX/Pallas equivalent of CenterCost.forward.

    gt_bbox: (4,), grid_points: (n, 2) -> (n,)
    (For performance, prefer caching `prepare_grid_points` and using
    `center_cost_batched` over G boxes.)
    """
    n = grid_points.shape[0]
    pts_slab = prepare_grid_points(grid_points)
    out = center_cost_batched(gt_bbox.reshape(1, 4), pts_slab, alpha, beta)
    return out[0, :n]   # module contract is (n,); padded lanes dropped here


def _reference_single(gt_bbox, grid_points, alpha=ALPHA, beta=BETA):
    center = (gt_bbox[:2] + gt_bbox[2:]) * 0.5
    dist = jnp.sqrt(jnp.sum((center[None, :] - grid_points) ** 2, axis=-1))
    return jnp.power(alpha, dist - beta)


def _reference_batched(gt_bboxes, grid_points, alpha=ALPHA, beta=BETA):
    centers = (gt_bboxes[:, :2] + gt_bboxes[:, 2:]) * 0.5                 # (G, 2)
    d = jnp.sqrt(jnp.sum((centers[:, None, :] - grid_points[None]) ** 2, -1))
    return jnp.power(alpha, d - beta)


if __name__ == "__main__":
    key = jax.random.PRNGKey(0)
    k1, k2, k3 = jax.random.split(key, 3)

    # Deterministic inputs consistent with the module: gt_bbox (4,), points (n, 2).
    xy_min = jax.random.uniform(k1, (2,), jnp.float32, 0.0, 4.0)
    wh = jax.random.uniform(k2, (2,), jnp.float32, 1.0, 4.0)
    gt_bbox = jnp.concatenate([xy_min, xy_min + wh])                     # (4,)

    # 1) Single-box path (exact module contract), small and mid sizes.
    for seed, n in ((1, 8), (2, 6000)):
        grid_points = jax.random.uniform(
            jax.random.PRNGKey(seed), (n, 2), jnp.float32, 0.0, 8.0)     # (n, 2)
        out = jax.block_until_ready(center_cost(gt_bbox, grid_points))
        ref = _reference_single(gt_bbox, grid_points)
        assert out.shape == (n,) and out.dtype == jnp.float32
        assert jnp.allclose(out, ref, rtol=1e-5, atol=1e-5), (n,)

    # 2) Batched path: G=3 boxes over a cached point slab.
    G, n = 3, 6000
    xy_min_b = jax.random.uniform(k3, (G, 2), jnp.float32, 0.0, 4.0)
    wh_b = jax.random.uniform(jax.random.PRNGKey(7), (G, 2), jnp.float32, 1.0, 4.0)
    gt_bboxes = jnp.concatenate([xy_min_b, xy_min_b + wh_b], axis=-1)    # (G, 4)
    grid_points = jax.random.uniform(
        jax.random.PRNGKey(9), (n, 2), jnp.float32, 0.0, 8.0)            # (n, 2)

    pts_slab = prepare_grid_points(grid_points)                          # cacheable
    out_b = jax.block_until_ready(center_cost_batched(gt_bboxes, pts_slab))
    ref_b = _reference_batched(gt_bboxes, grid_points)
    assert out_b.shape[0] == G and out_b.dtype == jnp.float32
    assert jnp.allclose(out_b[:, :n], ref_b, rtol=1e-5, atol=1e-5)

    print("KERNEL_OK")
</pallas_src>

<mosaic_0001>
module attributes {stable_mosaic.version = 11 : i64} {
  func.func @_center_cost_kernel(%arg0: i32, %arg1: memref<2xf32, #tpu.memory_space<smem>>, %arg2: memref<2x8x128xf32, #tpu.memory_space<vmem>>, %arg3: memref<1x8x128xf32, #tpu.memory_space<vmem>>) attributes {dimension_semantics = [#tpu.dimension_semantics<parallel>], iteration_bounds = array<i64: 1>, scalar_prefetch = 0 : i64, scratch_operands = 0 : i64, tpu.core_type = #tpu.core_type<tc>, window_params = [{transform_indices = @transform_0, window_bounds = array<i64: 2>}, {transform_indices = @transform_1, window_bounds = array<i64: 2, 8, 128>}, {transform_indices = @transform_2, window_bounds = array<i64: 1, 8, 128>}]} {
    %c0 = arith.constant 0 : index
    %c0_0 = arith.constant 0 : index
    %c0_1 = arith.constant 0 : index
    %0 = vector.load %arg2[%c0, %c0_0, %c0_1] : memref<2x8x128xf32, #tpu.memory_space<vmem>>, vector<1x8x128xf32>
    %1 = vector.shape_cast %0 : vector<1x8x128xf32> to vector<8x128xf32>
    %c1 = arith.constant 1 : index
    %c0_2 = arith.constant 0 : index
    %c0_3 = arith.constant 0 : index
    %2 = vector.load %arg2[%c1, %c0_2, %c0_3] : memref<2x8x128xf32, #tpu.memory_space<vmem>>, vector<1x8x128xf32>
    %3 = vector.shape_cast %2 : vector<1x8x128xf32> to vector<8x128xf32>
    %c0_4 = arith.constant 0 : index
    %4 = memref.load %arg1[%c0_4] : memref<2xf32, #tpu.memory_space<smem>>
    %5 = vector.broadcast %4 : f32 to vector<8x128xf32>
    %6 = arith.subf %5, %1 : vector<8x128xf32>
    %c1_5 = arith.constant 1 : index
    %7 = memref.load %arg1[%c1_5] : memref<2xf32, #tpu.memory_space<smem>>
    %8 = vector.broadcast %7 : f32 to vector<8x128xf32>
    %9 = arith.subf %8, %3 : vector<8x128xf32>
    %10 = arith.mulf %6, %6 : vector<8x128xf32>
    %11 = arith.mulf %9, %9 : vector<8x128xf32>
    %12 = arith.addf %10, %11 : vector<8x128xf32>
    %13 = math.sqrt %12 : vector<8x128xf32>
    %cst = arith.constant 3.000000e+00 : f32
    %14 = vector.broadcast %cst : f32 to vector<8x128xf32>
    %15 = arith.subf %13, %14 : vector<8x128xf32>
    %cst_6 = arith.constant 2.30258512 : f32
    %16 = vector.broadcast %cst_6 : f32 to vector<8x128xf32>
    %17 = arith.mulf %15, %16 : vector<8x128xf32>
    %18 = math.exp %17 : vector<8x128xf32>
    %c0_7 = arith.constant 0 : index
    %c0_8 = arith.constant 0 : index
    %c0_9 = arith.constant 0 : index
    %19 = vector.load %arg3[%c0_7, %c0_8, %c0_9] : memref<1x8x128xf32, #tpu.memory_space<vmem>>, vector<1x8x128xf32>
    %20 = vector.shape_cast %19 : vector<1x8x128xf32> to vector<8x128xf32>
    %21 = vector.shape_cast %18 : vector<8x128xf32> to vector<1x8x128xf32>
    tpu.vector_store %arg3[%c0_7, %c0_8, %c0_9], %21 {strides = array<i32>} : memref<1x8x128xf32, #tpu.memory_space<vmem>>, vector<1x8x128xf32>,
    return
  }
  func.func @transform_0(%arg0: i32) -> i32 {
    %c0_i32 = arith.constant 0 : i32
    %c0_i32_0 = arith.constant 0 : i32
    return %c0_i32 : i32
  }
  func.func @transform_1(%arg0: i32) -> (i32, i32, i32) {
    %c0_i32 = arith.constant 0 : i32
    %c0_i32_0 = arith.constant 0 : i32
    %c0_i32_1 = arith.constant 0 : i32
    return %c0_i32, %arg0, %c0_i32_0 : i32, i32, i32
  }
  func.func @transform_2(%arg0: i32) -> (i32, i32, i32) {
    %c0_i32 = arith.constant 0 : i32
    %c0_i32_0 = arith.constant 0 : i32
    %c0_i32_1 = arith.constant 0 : i32
    return %c0_i32, %arg0, %c0_i32_0 : i32, i32, i32
  }
}

</mosaic_0001>

<llo_original>
// kernel: tpu_custom_call.1
$region0: #{tpu_custom_call.1}
  #allocation0 [shape = 'u32[]', space=smem, size = 0x4, offset = 0x4, fixed_abs, tag = 'smem constant byte address 0x4 - core index']
  #allocation1 [shape = 'u32[144,128]{1,0:T(1,128)}', space=vmem, size = 0x12000, scoped, tag = 'internal scratch']
  %s0 = inlined_call_operand.hbm [shape: f32[2], index: 0, kind: input, shape index: {}]
  %s1 = inlined_call_operand.hbm [shape: f32[2,8,128], index: 1, kind: input, shape index: {}]
  %s2 = inlined_call_operand.hbm [shape: f32[1,8,128], index: 2, kind: output, shape index: {}]
  %s3 = sld [smem:[#allocation0]]
  $region26: #{tpu_custom_call.1} parent=0
    _
  %s5 = ssub.s32 1, %s3
  %s6 = scalar_select 0, %s5, %s3
  $region1: #{tpu_custom_call.1} parent=0
    #allocation2 [shape = 'u8[512]{0}', space=smem, size = 0x200, scoped, tag = 'input window, operand 0, single buffered']
    #allocation3 [shape = 's32[1]{0}', space=sflag, size = 0x4, scoped, tag = 'scoped memory for tpu_custom_call.1']
    #allocation4 [shape = 's32[1]{0}', space=sflag, size = 0x4, scoped, tag = 'scoped memory for tpu_custom_call.1']
    #allocation5 [shape = 's32[1]{0}', space=sflag, size = 0x4, scoped, tag = 'scoped memory for tpu_custom_call.1']
    #allocation6 [shape = 'u8[8192]{0}', space=vmem, size = 0x2000, scoped, tag = 'input window, operand 1, single buffered']
    #allocation7 [shape = 'u8[4096]{0}', space=vmem, size = 0x1000, scoped, tag = 'output window, operand 0, single buffered']
    %7 = vsyncpa [#allocation5], 0
    %8 = vsyncpa [#allocation3], 0
    %9 = vsyncpa [#allocation4], 0
    // Predicated region
    $region2: #{tpu_custom_call.1} parent=1 // pred_check
      _
    $region3: #{tpu_custom_call.1} parent=1 // pred_check_branch
      %11 = sbr.rel (0) target = $region5
    $region4: #{tpu_custom_call.1} parent=1 // pred_region
      %s13 = ssub.s32 16, 16
      %14 = vsyncadd [#allocation5], %s13
      %17 = dma.hbm_to_smem %s0, 16, [#allocation2], [#allocation5]
    $region5: #{tpu_custom_call.1} parent=1 // pred_fallthru
      _
    // Predicated region
    $region6: #{tpu_custom_call.1} parent=1 // pred_check
      _
    $region7: #{tpu_custom_call.1} parent=1 // pred_check_branch
      %19 = sbr.rel (0) target = $region9
    $region8: #{tpu_custom_call.1} parent=1 // pred_region
      %s21 = ssub.s32 256, 256
      %22 = vsyncadd [#allocation3], %s21
      %s23 = sshll.u32 [#allocation6], 4
      %s24 = int_to_ptr.vmem [resolvable:$true] %s23
      %29 = dma.hbm_to_vmem [thread:$0]  %s1, 256, %s24, [#allocation3], 128, 128, 8
    $region9: #{tpu_custom_call.1} parent=1 // pred_fallthru
      _
    // Predicated region
    $region10: #{tpu_custom_call.1} parent=1 // pred_check
      _
    $region11: #{tpu_custom_call.1} parent=1 // pred_check_branch
      %31 = sbr.rel (0) target = $region13
    $region12: #{tpu_custom_call.1} parent=1 // pred_region
      %32 = dma.done [#allocation5], 16
    $region13: #{tpu_custom_call.1} parent=1 // pred_fallthru
      _
    // Predicated region
    $region14: #{tpu_custom_call.1} parent=1 // pred_check
      _
    $region15: #{tpu_custom_call.1} parent=1 // pred_check_branch
      %34 = sbr.rel (0) target = $region17
    $region16: #{tpu_custom_call.1} parent=1 // pred_region
      %35 = dma.done [#allocation3], 256
    $region17: #{tpu_custom_call.1} parent=1 // pred_fallthru
      _
    %36 = sfence
    %v37 = vld [vmem:[#allocation6] sm:$0xff]
    %s38 = scalar_lea.vmem [#allocation6], 8
    %v39 = vld [vmem:[%s38] sm:$0xff]
    %s40 = sld [smem:[#allocation2]]
    %v41 = vstv %s40
    %v42 = vsub.f32 %v41, %v37
    %s43 = sld [smem:[#allocation2 + $0x1]]
    %v44 = vstv %s43
    %v45 = vsub.f32 %v44, %v39
    %v46 = vmul.f32 %v42, %v42
    %v47 = vmul.f32 %v45, %v45
    %v48 = vadd.f32 %v46, %v47
    %v49 = vrsqrt.pop %v48
    %v50 = vmul.f32 %v48, %v49
    %vm51 = vcmp.eq.f32.partialorder %v48, inf
    %v52 = vsel %vm51, %v48, %v50
    %vm53 = vcmp.eq.f32.partialorder %v48, 0.0
    %v54 = vand.u32 %v48, 2147483648
    %v55 = vsel %vm53, %v54, %v52
    %v56 = vsub.f32 %v55, 3.0
    %v57 = vmul.f32 %v56, 2.3025851
    %v58 = vmul.f32 %v57, 1.442695
    %v59 = vpow.pop %v58
    %60 = vst [vmem:[#allocation7] sm:$0xff] %v59
    // Predicated region
    $region18: #{tpu_custom_call.1} parent=1 // pred_check
      _
    $region19: #{tpu_custom_call.1} parent=1 // pred_check_branch
      %62 = sbr.rel (0) target = $region21
    $region20: #{tpu_custom_call.1} parent=1 // pred_region
      %s64 = ssub.s32 128, 128
      %65 = vsyncadd [#allocation4], %s64
      %s67 = sshll.u32 [#allocation7], 4
      %s68 = int_to_ptr.vmem [resolvable:$true] %s67
      %70 = dma.vmem_to_hbm [thread:$0]  %s68, 128, %s2, [#allocation4]
    $region21: #{tpu_custom_call.1} parent=1 // pred_fallthru
      _
    // Predicated region
    $region22: #{tpu_custom_call.1} parent=1 // pred_check
      _
    $region23: #{tpu_custom_call.1} parent=1 // pred_check_branch
      %72 = sbr.rel (0) target = $region25
    $region24: #{tpu_custom_call.1} parent=1 // pred_region
      %73 = dma.done [#allocation4], 128
    $region25: #{tpu_custom_call.1} parent=1 // pred_fallthru
      _
    %74 = vsyncpa [#allocation3], 1
    %75 = vsyncpa [#allocation4], 1
    %76 = vsyncpa [#allocation5], 1

</llo_original>
